<compile_context>
chip_gen: v7x
topology: tpu7x:2x2x1
jax: 0.10.0
libtpu: 0.0.40
codegen_flags: <defaults>
</compile_context>

<pallas_src>
import jax
import jax.numpy as jnp
from jax.experimental import pallas as pl
from jax.experimental.pallas import tpu as pltpu


def _round_up(x, m):
    return ((x + m - 1) // m) * m


def _choose_tm(B):
    # Big tiles amortize the ~0.35us/grid-step fixed overhead; keep >= 2 grid
    # steps when B allows so the "parallel" batch axis can be sharded across
    # both v7x TensorCores.  (1024,512) f32 tile x3 buffers + (1024,128) f32
    # output x2 is < 8 MiB: far under the scoped-VMEM default on v5e/v6e/v7x.
    cap = 1024
    half = _round_up(max((B + 1) // 2, 8), 8)
    return max(8, min(cap, half))


# ----------------------------- kernels --------------------------------------


def _cls_kernel_expr(feat_ref, expr_ref, w_ref, wb_ref, o_ref):
    # feat (tm,F) f32 | expr (tm,1) f32 | w (F,Cp) bf16
    # wb (2,Cp) f32: row0 = expression weight (0-padded), row1 = bias (-inf padded)
    x = feat_ref[...].astype(jnp.bfloat16)          # in-VMEM cast, hidden under DMA
    logits = jnp.dot(x, w_ref[...], preferred_element_type=jnp.float32)
    wb = wb_ref[...]
    logits = logits + expr_ref[...] * wb[0:1, :] + wb[1:2, :]
    m = jnp.max(logits, axis=-1, keepdims=True)
    e = jnp.exp(logits - m)                         # padded classes: exp(-inf) == 0
    denom = jnp.sum(e, axis=-1, keepdims=True)
    o_ref[...] = (e / denom).astype(o_ref.dtype)    # exact divide: rows sum to 1


def _cls_kernel_noexpr(feat_ref, w_ref, b_ref, o_ref):
    x = feat_ref[...].astype(jnp.bfloat16)
    logits = jnp.dot(x, w_ref[...], preferred_element_type=jnp.float32) + b_ref[...]
    m = jnp.max(logits, axis=-1, keepdims=True)
    e = jnp.exp(logits - m)
    denom = jnp.sum(e, axis=-1, keepdims=True)
    o_ref[...] = (e / denom).astype(o_ref.dtype)


# --------------------------- wrapper API -------------------------------------


def prepare_classifier_params(weight, bias, feat_dim, *, withexpression):
    """One-time weight preprocessing; call at model load and cache the result.

    weight: PyTorch nn.Linear layout (class_N, in_dim); bias: (class_N,).
    Produces a (feat_dim, Cp) bf16 MXU operand (class dim padded to 128 lanes)
    and a merged (2, Cp) f32 [expression-weight-row; bias] operand with -inf
    bias padding so padded classes get exactly zero softmax mass.
    """
    weight = jnp.asarray(weight, jnp.float32)
    bias = jnp.asarray(bias, jnp.float32)
    C, in_dim = weight.shape
    Cp = _round_up(C, 128)

    if withexpression:
        assert in_dim == feat_dim + 1
        w_feat = weight[:, :feat_dim].T            # (F, C)
        w_expr = weight[:, feat_dim:].T            # (1, C)
    else:
        assert in_dim == feat_dim
        w_feat = weight.T                          # (F, C)

    w_feat_p = jnp.zeros((feat_dim, Cp), jnp.bfloat16).at[:, :C].set(
        w_feat.astype(jnp.bfloat16))
    bias_row = jnp.full((1, Cp), -jnp.inf, jnp.float32).at[:, :C].set(bias[None, :])

    if withexpression:
        wexpr_row = jnp.zeros((1, Cp), jnp.float32).at[:, :C].set(w_expr)
        return {"w_feat": w_feat_p,
                "wb": jnp.concatenate([wexpr_row, bias_row], axis=0),
                "class_n": C}
    return {"w_feat": w_feat_p, "bias": bias_row, "class_n": C}


def classifier_apply(features, expression, params, *, withexpression):
    """features: (B, 512*expansion) f32, expression: (B, 1) (ignored if
    withexpression=False), params: output of prepare_classifier_params."""
    features = jnp.asarray(features, jnp.float32)
    B, F = features.shape
    w_feat = params["w_feat"]
    C = params["class_n"]
    Cp = w_feat.shape[1]

    tm = _choose_tm(B)
    grid = pl.cdiv(B, tm)          # partial tail block: Pallas masks the store

    if grid >= 3:
        feat_spec = pl.BlockSpec((tm, F), lambda i: (i, 0),
                                 pipeline_mode=pl.Buffered(3))
    else:
        feat_spec = pl.BlockSpec((tm, F), lambda i: (i, 0))

    cost = pl.CostEstimate(
        flops=2 * B * F * Cp,
        transcendentals=B * Cp,
        bytes_accessed=(features.size * 4 + w_feat.size * 2 + 2 * Cp * 4
                        + B * Cp * 4 + (B * 4 if withexpression else 0)),
    )
    cparams = pltpu.CompilerParams(dimension_semantics=("parallel",))

    if withexpression:
        expr = jnp.asarray(expression, jnp.float32).reshape(B, 1)
        out = pl.pallas_call(
            _cls_kernel_expr,
            out_shape=jax.ShapeDtypeStruct((B, Cp), jnp.float32),
            grid_spec=pltpu.PrefetchScalarGridSpec(
                num_scalar_prefetch=0,
                grid=(grid,),
                in_specs=[
                    feat_spec,                                   # features (f32)
                    pl.BlockSpec((tm, 1), lambda i: (i, 0)),     # expression col
                    pl.BlockSpec((F, Cp), lambda i: (0, 0)),     # bf16 weight (resident)
                    pl.BlockSpec((2, Cp), lambda i: (0, 0)),     # [w_expr; bias]
                ],
                out_specs=pl.BlockSpec((tm, Cp), lambda i: (i, 0)),
            ),
            compiler_params=cparams,
            cost_estimate=cost,
        )(features, expr, w_feat, params["wb"])
    else:
        out = pl.pallas_call(
            _cls_kernel_noexpr,
            out_shape=jax.ShapeDtypeStruct((B, Cp), jnp.float32),
            grid_spec=pltpu.PrefetchScalarGridSpec(
                num_scalar_prefetch=0,
                grid=(grid,),
                in_specs=[
                    feat_spec,
                    pl.BlockSpec((F, Cp), lambda i: (0, 0)),
                    pl.BlockSpec((1, Cp), lambda i: (0, 0)),
                ],
                out_specs=pl.BlockSpec((tm, Cp), lambda i: (i, 0)),
            ),
            compiler_params=cparams,
            cost_estimate=cost,
        )(features, w_feat, params["bias"])

    # TODO(synk): if the downstream consumer tolerates the 128-padded class
    # layout, drop this slice — it costs one extra pass over the (B, Cp) output.
    return out[:, :C]


# Convenience: raw PyTorch-layout weights in, probabilities out (prep NOT cached).
def classifier_forward(features, expression, weight, bias, *, withexpression):
    feat_dim = jnp.asarray(features).shape[1]
    params = prepare_classifier_params(weight, bias, feat_dim,
                                       withexpression=withexpression)
    return classifier_apply(features, expression, params,
                            withexpression=withexpression)


if __name__ == "__main__":
    expansion = 1                       # block.expansion = 1 -> 512 features
    class_N = 7
    feat_dim = 512 * expansion

    key = jax.random.PRNGKey(0)

    # (B, withexpression): small demo, 2-step grid with partial tail,
    # and a 3-step grid that exercises the Buffered(3) feature pipeline.
    configs = [(8, True), (8, False), (300, True), (2200, True)]

    for B, withexpression in configs:
        k_x, k_e, k_w, k_b = jax.random.split(jax.random.fold_in(key, B), 4)
        features = jax.random.normal(k_x, (B, feat_dim), dtype=jnp.float32)
        expression = jax.random.normal(k_e, (B, 1), dtype=jnp.float32)

        in_dim = feat_dim + (1 if withexpression else 0)
        bound = 1.0 / (in_dim ** 0.5)
        weight = jax.random.uniform(k_w, (class_N, in_dim), minval=-bound,
                                    maxval=bound, dtype=jnp.float32)
        bias = jax.random.uniform(k_b, (class_N,), minval=-bound,
                                  maxval=bound, dtype=jnp.float32)

        # One-time prep (would be cached at model load in real serving).
        params = prepare_classifier_params(weight, bias, feat_dim,
                                           withexpression=withexpression)
        out = classifier_apply(features, expression, params,
                               withexpression=withexpression)
        out = jax.block_until_ready(out)
        assert out.shape == (B, class_N)

        x = (jnp.concatenate([features, expression], axis=1)
             if withexpression else features)

        # Reference 1: same bf16 MXU dtypes as the kernel (tight check).
        logits_bf = jnp.dot(features.astype(jnp.bfloat16),
                            weight[:, :feat_dim].T.astype(jnp.bfloat16),
                            preferred_element_type=jnp.float32)
        if withexpression:
            logits_bf = logits_bf + expression @ weight[:, feat_dim:].T
        logits_bf = logits_bf + bias
        ref_bf = jax.nn.softmax(logits_bf, axis=1)
        assert jnp.allclose(out, ref_bf, atol=5e-3, rtol=5e-3), \
            f"mismatch vs bf16 reference (B={B}, expr={withexpression})"

        # Reference 2: full f32 reference (looser: covers bf16 quantization).
        ref_f32 = jax.nn.softmax(x @ weight.T + bias, axis=1)
        assert jnp.allclose(out, ref_f32, atol=3e-2, rtol=3e-2), \
            f"mismatch vs f32 reference (B={B}, expr={withexpression})"

        # Exact divide -> each row sums to 1 within f32 rounding.
        assert jnp.allclose(jnp.sum(out, axis=1), 1.0, atol=1e-4)

    print("KERNEL_OK")
</pallas_src>

<mosaic_0001>
module attributes {stable_mosaic.version = 11 : i64} {
  func.func @_cls_kernel_expr(%arg0: i32, %arg1: memref<8x512xf32, #tpu.memory_space<vmem>>, %arg2: memref<8x1xf32, #tpu.memory_space<vmem>>, %arg3: memref<512x128xbf16, #tpu.memory_space<vmem>>, %arg4: memref<2x128xf32, #tpu.memory_space<vmem>>, %arg5: memref<8x128xf32, #tpu.memory_space<vmem>>) attributes {dimension_semantics = [#tpu.dimension_semantics<parallel>], iteration_bounds = array<i64: 1>, scalar_prefetch = 0 : i64, scratch_operands = 0 : i64, tpu.core_type = #tpu.core_type<tc>, window_params = [{transform_indices = @transform_0, window_bounds = array<i64: 8, 512>}, {transform_indices = @transform_1, window_bounds = array<i64: 8, 1>}, {pipeline_mode = #tpu.pipeline_mode<synchronous>, transform_indices = @transform_2, window_bounds = array<i64: 512, 128>}, {pipeline_mode = #tpu.pipeline_mode<synchronous>, transform_indices = @transform_3, window_bounds = array<i64: 2, 128>}, {transform_indices = @transform_4, window_bounds = array<i64: 8, 128>}]} {
    %c0 = arith.constant 0 : index
    %c0_0 = arith.constant 0 : index
    %0 = vector.load %arg1[%c0, %c0_0] : memref<8x512xf32, #tpu.memory_space<vmem>>, vector<8x512xf32>
    %1 = arith.truncf %0 : vector<8x512xf32> to vector<8x512xbf16>
    %c0_1 = arith.constant 0 : index
    %c0_2 = arith.constant 0 : index
    %2 = vector.load %arg3[%c0_1, %c0_2] : memref<512x128xbf16, #tpu.memory_space<vmem>>, vector<512x128xbf16>
    %cst = arith.constant dense<0.000000e+00> : vector<8x128xf32>
    %3 = tpu.matmul %1, %2, %cst {dimension_numbers = #tpu.dot_dimension_numbers<[1], [0], [0], [1], [0, 0, 1, 1], [], []>} : vector<8x512xbf16>, vector<512x128xbf16>, vector<8x128xf32> -> vector<8x128xf32>
    %c0_3 = arith.constant 0 : index
    %c0_4 = arith.constant 0 : index
    %4 = vector.load %arg4[%c0_3, %c0_4] : memref<2x128xf32, #tpu.memory_space<vmem>>, vector<2x128xf32>
    %c0_5 = arith.constant 0 : index
    %c0_6 = arith.constant 0 : index
    %5 = vector.load %arg2[%c0_5, %c0_6] : memref<8x1xf32, #tpu.memory_space<vmem>>, vector<8x1xf32>
    %6 = vector.extract_strided_slice %4 {offsets = [0, 0], sizes = [1, 128], strides = [1, 1]} : vector<2x128xf32> to vector<1x128xf32>
    %7 = vector.broadcast %5 : vector<8x1xf32> to vector<8x128xf32>
    %8 = vector.broadcast %6 : vector<1x128xf32> to vector<8x128xf32>
    %9 = arith.mulf %7, %8 : vector<8x128xf32>
    %10 = arith.addf %3, %9 : vector<8x128xf32>
    %11 = vector.extract_strided_slice %4 {offsets = [1, 0], sizes = [1, 128], strides = [1, 1]} : vector<2x128xf32> to vector<1x128xf32>
    %12 = vector.broadcast %11 : vector<1x128xf32> to vector<8x128xf32>
    %13 = arith.addf %10, %12 : vector<8x128xf32>
    %cst_7 = arith.constant dense<0xFF800000> : vector<8xf32>
    %14 = vector.multi_reduction <maximumf>, %13, %cst_7 [1] : vector<8x128xf32> to vector<8xf32>
    %15 = vector.shape_cast %14 : vector<8xf32> to vector<8x1xf32>
    %16 = vector.broadcast %15 : vector<8x1xf32> to vector<8x128xf32>
    %17 = arith.subf %13, %16 : vector<8x128xf32>
    %18 = math.exp %17 : vector<8x128xf32>
    %cst_8 = arith.constant dense<0.000000e+00> : vector<8xf32>
    %19 = vector.multi_reduction <add>, %18, %cst_8 [1] : vector<8x128xf32> to vector<8xf32>
    %20 = vector.shape_cast %19 : vector<8xf32> to vector<8x1xf32>
    %21 = vector.broadcast %20 : vector<8x1xf32> to vector<8x128xf32>
    %22 = arith.divf %18, %21 : vector<8x128xf32>
    %c0_9 = arith.constant 0 : index
    %c0_10 = arith.constant 0 : index
    %23 = vector.load %arg5[%c0_9, %c0_10] : memref<8x128xf32, #tpu.memory_space<vmem>>, vector<8x128xf32>
    tpu.vector_store %arg5[%c0_9, %c0_10], %22 {strides = array<i32>} : memref<8x128xf32, #tpu.memory_space<vmem>>, vector<8x128xf32>,
    return
  }
  func.func @transform_0(%arg0: i32) -> (i32, i32) {
    %c0_i32 = arith.constant 0 : i32
    %c0_i32_0 = arith.constant 0 : i32
    return %arg0, %c0_i32 : i32, i32
  }
  func.func @transform_1(%arg0: i32) -> (i32, i32) {
    %c0_i32 = arith.constant 0 : i32
    %c0_i32_0 = arith.constant 0 : i32
    return %arg0, %c0_i32 : i32, i32
  }
  func.func @transform_2(%arg0: i32) -> (i32, i32) {
    %c0_i32 = arith.constant 0 : i32
    %c0_i32_0 = arith.constant 0 : i32
    %c0_i32_1 = arith.constant 0 : i32
    return %c0_i32, %c0_i32_0 : i32, i32
  }
  func.func @transform_3(%arg0: i32) -> (i32, i32) {
    %c0_i32 = arith.constant 0 : i32
    %c0_i32_0 = arith.constant 0 : i32
    %c0_i32_1 = arith.constant 0 : i32
    return %c0_i32, %c0_i32_0 : i32, i32
  }
  func.func @transform_4(%arg0: i32) -> (i32, i32) {
    %c0_i32 = arith.constant 0 : i32
    %c0_i32_0 = arith.constant 0 : i32
    return %arg0, %c0_i32 : i32, i32
  }
}

</mosaic_0001>

<llo_original>
// kernel: tpu_custom_call.1
$region0: #{tpu_custom_call.1}
  #allocation0 [shape = 'u32[]', space=smem, size = 0x4, offset = 0x4, fixed_abs, tag = 'smem constant byte address 0x4 - core index']
  #allocation1 [shape = 'u32[144,128]{1,0:T(1,128)}', space=vmem, size = 0x12000, scoped, tag = 'internal scratch']
  %s0 = inlined_call_operand.hbm [shape: f32[8,512], index: 0, kind: input, shape index: {}]
  %s1 = inlined_call_operand.vmem [shape: f32[8,1], index: 1, kind: input, shape index: {}]
  %s2 = inlined_call_operand.hbm [shape: bf16[512,128], index: 2, kind: input, shape index: {}]
  %s3 = inlined_call_operand.vmem [shape: f32[2,128], index: 3, kind: input, shape index: {}]
  %s4 = inlined_call_operand.hbm [shape: f32[8,128], index: 4, kind: output, shape index: {}]
  %s5 = sld [smem:[#allocation0]]
  $region34: #{tpu_custom_call.1} parent=0
    _
  %s7 = ssub.s32 1, %s5
  %s8 = scalar_select 0, %s7, %s5
  $region1: #{tpu_custom_call.1} parent=0
    #allocation2 [shape = 'u8[16384]{0}', space=vmem, size = 0x4000, scoped, tag = 'input window, operand 0, single buffered']
    #allocation3 [shape = 's32[1]{0}', space=sflag, size = 0x4, scoped, tag = 'scoped memory for tpu_custom_call.1']
    #allocation4 [shape = 's32[1]{0}', space=sflag, size = 0x4, scoped, tag = 'scoped memory for tpu_custom_call.1']
    #allocation5 [shape = 'u8[131072]{0}', space=vmem, size = 0x20000, scoped, tag = 'input window, operand 2, single buffered']
    #allocation6 [shape = 's32[1]{0}', space=sflag, size = 0x4, scoped, tag = 'scoped memory for tpu_custom_call.1']
    #allocation7 [shape = 'u8[4096]{0}', space=vmem, size = 0x1000, scoped, tag = 'output window, operand 0, single buffered']
    %9 = vsyncpa [#allocation3], 0
    %10 = vsyncpa [#allocation6], 0
    %11 = vsyncpa [#allocation4], 0
    // Predicated region
    $region2: #{tpu_custom_call.1} parent=1 // pred_check
      _
    $region3: #{tpu_custom_call.1} parent=1 // pred_check_branch
      %13 = sbr.rel (0) target = $region5
    $region4: #{tpu_custom_call.1} parent=1 // pred_region
      %s15 = ssub.s32 512, 512
      %16 = vsyncadd [#allocation3], %s15
      %s18 = sshll.u32 [#allocation2], 4
      %s19 = int_to_ptr.vmem [resolvable:$true] %s18
      %21 = dma.hbm_to_vmem [thread:$0]  %s0, 512, %s19, [#allocation3]
    $region5: #{tpu_custom_call.1} parent=1 // pred_fallthru
      _
    // Predicated region
    $region6: #{tpu_custom_call.1} parent=1 // pred_check
      _
    $region7: #{tpu_custom_call.1} parent=1 // pred_check_branch
      %23 = sbr.rel (0) target = $region9
    $region8: #{tpu_custom_call.1} parent=1 // pred_region
      _
    $region9: #{tpu_custom_call.1} parent=1 // pred_fallthru
      _
    // Predicated region
    $region10: #{tpu_custom_call.1} parent=1 // pred_check
      _
    $region11: #{tpu_custom_call.1} parent=1 // pred_check_branch
      %25 = sbr.rel (0) target = $region13
    $region12: #{tpu_custom_call.1} parent=1 // pred_region
      %s27 = ssub.s32 4096, 4096
      %28 = vsyncadd [#allocation6], %s27
      %s29 = sshll.u32 [#allocation5], 4
      %s30 = int_to_ptr.vmem [resolvable:$true] %s29
      %35 = dma.hbm_to_vmem [thread:$0]  %s2, 4096, %s30, [#allocation6], 64, 64, 4
    $region13: #{tpu_custom_call.1} parent=1 // pred_fallthru
      _
    // Predicated region
    $region14: #{tpu_custom_call.1} parent=1 // pred_check
      _
    $region15: #{tpu_custom_call.1} parent=1 // pred_check_branch
      %37 = sbr.rel (0) target = $region17
    $region16: #{tpu_custom_call.1} parent=1 // pred_region
      _
    $region17: #{tpu_custom_call.1} parent=1 // pred_fallthru
      _
    // Predicated region
    $region18: #{tpu_custom_call.1} parent=1 // pred_check
      _
    $region19: #{tpu_custom_call.1} parent=1 // pred_check_branch
      %39 = sbr.rel (0) target = $region21
    $region20: #{tpu_custom_call.1} parent=1 // pred_region
      %40 = dma.done [#allocation3], 512
    $region21: #{tpu_custom_call.1} parent=1 // pred_fallthru
      _
    // Predicated region
    $region22: #{tpu_custom_call.1} parent=1 // pred_check
      _
    $region23: #{tpu_custom_call.1} parent=1 // pred_check_branch
      %42 = sbr.rel (0) target = $region25
    $region24: #{tpu_custom_call.1} parent=1 // pred_region
      %43 = dma.done [#allocation6], 4096
    $region25: #{tpu_custom_call.1} parent=1 // pred_fallthru
      _
    %v45 = vld [vmem:[#allocation2] sm:$0xff]
    %v46 = vld [vmem:[#allocation2 + $0x8] sm:$0xff]
    %v47 = vld [vmem:[#allocation2 + $0x10] sm:$0xff]
    %v48 = vld [vmem:[#allocation2 + $0x18] sm:$0xff]
    %v49 = vpack.c.bf16 %v45, %v45
    %v50 = vpack.c.bf16 %v46, %v46
    %v51 = vpack.c.bf16 %v47, %v47
    %v52 = vpack.c.bf16 %v48, %v48
    %v53 = vld [vmem:[#allocation5] sm:$0xf]
    %v54 = vld [vmem:[#allocation5 + $0x4] sm:$0xf]
    %v55 = vld [vmem:[#allocation5 + $0x8] sm:$0xf]
    %v56 = vld [vmem:[#allocation5 + $0xc] sm:$0xf]
    %v57 = vld [vmem:[#allocation5 + $0x10] sm:$0xf]
    %v58 = vld [vmem:[#allocation5 + $0x14] sm:$0xf]
    %v59 = vld [vmem:[#allocation5 + $0x18] sm:$0xf]
    %v60 = vld [vmem:[#allocation5 + $0x1c] sm:$0xf]
    %v61 = vld [vmem:[#allocation5 + $0x20] sm:$0xf]
    %v62 = vld [vmem:[#allocation5 + $0x24] sm:$0xf]
    %v63 = vld [vmem:[#allocation5 + $0x28] sm:$0xf]
    %v64 = vld [vmem:[#allocation5 + $0x2c] sm:$0xf]
    %v65 = vld [vmem:[#allocation5 + $0x30] sm:$0xf]
    %v66 = vld [vmem:[#allocation5 + $0x34] sm:$0xf]
    %v67 = vld [vmem:[#allocation5 + $0x38] sm:$0xf]
    %v68 = vld [vmem:[#allocation5 + $0x3c] sm:$0xf]
    %v69 = vld [vmem:[#allocation5 + $0x40] sm:$0xf]
    %v70 = vld [vmem:[#allocation5 + $0x44] sm:$0xf]
    %v71 = vld [vmem:[#allocation5 + $0x48] sm:$0xf]
    %v72 = vld [vmem:[#allocation5 + $0x4c] sm:$0xf]
    %v73 = vld [vmem:[#allocation5 + $0x50] sm:$0xf]
    %v74 = vld [vmem:[#allocation5 + $0x54] sm:$0xf]
    %v75 = vld [vmem:[#allocation5 + $0x58] sm:$0xf]
    %v76 = vld [vmem:[#allocation5 + $0x5c] sm:$0xf]
    %v77 = vld [vmem:[#allocation5 + $0x60] sm:$0xf]
    %v78 = vld [vmem:[#allocation5 + $0x64] sm:$0xf]
    %v79 = vld [vmem:[#allocation5 + $0x68] sm:$0xf]
    %v80 = vld [vmem:[#allocation5 + $0x6c] sm:$0xf]
    %v81 = vld [vmem:[#allocation5 + $0x70] sm:$0xf]
    %v82 = vld [vmem:[#allocation5 + $0x74] sm:$0xf]
    %v83 = vld [vmem:[#allocation5 + $0x78] sm:$0xf]
    %v84 = vld [vmem:[#allocation5 + $0x7c] sm:$0xf]
    %v85 = vld [vmem:[#allocation5 + $0x80] sm:$0xf]
    %v86 = vld [vmem:[#allocation5 + $0x84] sm:$0xf]
    %v87 = vld [vmem:[#allocation5 + $0x88] sm:$0xf]
    %v88 = vld [vmem:[#allocation5 + $0x8c] sm:$0xf]
    %v89 = vld [vmem:[#allocation5 + $0x90] sm:$0xf]
    %v90 = vld [vmem:[#allocation5 + $0x94] sm:$0xf]
    %v91 = vld [vmem:[#allocation5 + $0x98] sm:$0xf]
    %v92 = vld [vmem:[#allocation5 + $0x9c] sm:$0xf]
    %v93 = vld [vmem:[#allocation5 + $0xa0] sm:$0xf]
    %v94 = vld [vmem:[#allocation5 + $0xa4] sm:$0xf]
    %v95 = vld [vmem:[#allocation5 + $0xa8] sm:$0xf]
    %v96 = vld [vmem:[#allocation5 + $0xac] sm:$0xf]
    %v97 = vld [vmem:[#allocation5 + $0xb0] sm:$0xf]
    %v98 = vld [vmem:[#allocation5 + $0xb4] sm:$0xf]
    %v99 = vld [vmem:[#allocation5 + $0xb8] sm:$0xf]
    %v100 = vld [vmem:[#allocation5 + $0xbc] sm:$0xf]
    %v101 = vld [vmem:[#allocation5 + $0xc0] sm:$0xf]
    %v102 = vld [vmem:[#allocation5 + $0xc4] sm:$0xf]
    %v103 = vld [vmem:[#allocation5 + $0xc8] sm:$0xf]
    %v104 = vld [vmem:[#allocation5 + $0xcc] sm:$0xf]
    %v105 = vld [vmem:[#allocation5 + $0xd0] sm:$0xf]
    %v106 = vld [vmem:[#allocation5 + $0xd4] sm:$0xf]
    %v107 = vld [vmem:[#allocation5 + $0xd8] sm:$0xf]
    %v108 = vld [vmem:[#allocation5 + $0xdc] sm:$0xf]
    %v109 = vld [vmem:[#allocation5 + $0xe0] sm:$0xf]
    %v110 = vld [vmem:[#allocation5 + $0xe4] sm:$0xf]
    %v111 = vld [vmem:[#allocation5 + $0xe8] sm:$0xf]
    %v112 = vld [vmem:[#allocation5 + $0xec] sm:$0xf]
    %v113 = vld [vmem:[#allocation5 + $0xf0] sm:$0xf]
    %v114 = vld [vmem:[#allocation5 + $0xf4] sm:$0xf]
    %v115 = vld [vmem:[#allocation5 + $0xf8] sm:$0xf]
    %v116 = vld [vmem:[#allocation5 + $0xfc] sm:$0xf]
    %v117 = vld [vmem:[%s3] sm:$0x3]
    %v118 = vld [vmem:[%s1] sm:$0xff]
    %120 = vset.pattern.permute.xlu0 0
    %121 = vperm.xlu0 %120, %v118
    %v122 = vpop.permute.xlu0 %121
    %v124 = vlaneseq
    %v125 = vshrl.u32 %v124, 7
    %v126 = vsub.s32 0, %v125
    %v127 = vrot.slane %v117, %v126
    %v128 = vmul.f32 %v122, %v127
    %v193 = vunpack.c.l.b16 %v53
    %v194 = vunpack.c.l.b16 %v54
    %v195 = vunpack.c.l.b16 %v55
    %v196 = vunpack.c.l.b16 %v56
    %v197 = vunpack.c.l.b16 %v57
    %v198 = vunpack.c.l.b16 %v58
    %v199 = vunpack.c.l.b16 %v59
    %v200 = vunpack.c.l.b16 %v60
    %v201 = vunpack.c.l.b16 %v61
    %v202 = vunpack.c.l.b16 %v62
    %v203 = vunpack.c.l.b16 %v63
    %v204 = vunpack.c.l.b16 %v64
    %v205 = vunpack.c.l.b16 %v65
    %v206 = vunpack.c.l.b16 %v66
    %v207 = vunpack.c.l.b16 %v67
    %v208 = vunpack.c.l.b16 %v68
    %v209 = vunpack.c.l.b16 %v69
    %v210 = vunpack.c.l.b16 %v70
    %v211 = vunpack.c.l.b16 %v71
    %v212 = vunpack.c.l.b16 %v72
    %v213 = vunpack.c.l.b16 %v73
    %v214 = vunpack.c.l.b16 %v74
    %v215 = vunpack.c.l.b16 %v75
    %v216 = vunpack.c.l.b16 %v76
    %v217 = vunpack.c.l.b16 %v77
    %v218 = vunpack.c.l.b16 %v78
    %v219 = vunpack.c.l.b16 %v79
    %v220 = vunpack.c.l.b16 %v80
    %v221 = vunpack.c.l.b16 %v81
    %v222 = vunpack.c.l.b16 %v82
    %v223 = vunpack.c.l.b16 %v83
    %v224 = vunpack.c.l.b16 %v84
    %v225 = vunpack.c.l.b16 %v85
    %v226 = vunpack.c.l.b16 %v86
    %v227 = vunpack.c.l.b16 %v87
    %v228 = vunpack.c.l.b16 %v88
    %v229 = vunpack.c.l.b16 %v89
    %v230 = vunpack.c.l.b16 %v90
    %v231 = vunpack.c.l.b16 %v91
    %v232 = vunpack.c.l.b16 %v92
    %v233 = vunpack.c.l.b16 %v93
    %v234 = vunpack.c.l.b16 %v94
    %v235 = vunpack.c.l.b16 %v95
    %v236 = vunpack.c.l.b16 %v96
    %v237 = vunpack.c.l.b16 %v97
    %v238 = vunpack.c.l.b16 %v98
    %v239 = vunpack.c.l.b16 %v99
    %v240 = vunpack.c.l.b16 %v100
    %v241 = vunpack.c.l.b16 %v101
    %v242 = vunpack.c.l.b16 %v102
    %v243 = vunpack.c.l.b16 %v103
    %v244 = vunpack.c.l.b16 %v104
    %v245 = vunpack.c.l.b16 %v105
    %v246 = vunpack.c.l.b16 %v106
    %v247 = vunpack.c.l.b16 %v107
    %v248 = vunpack.c.l.b16 %v108
    %v249 = vunpack.c.l.b16 %v109
    %v250 = vunpack.c.l.b16 %v110
    %v251 = vunpack.c.l.b16 %v111
    %v252 = vunpack.c.l.b16 %v112
    %v253 = vunpack.c.l.b16 %v113
    %v254 = vunpack.c.l.b16 %v114
    %v255 = vunpack.c.l.b16 %v115
    %v256 = vunpack.c.l.b16 %v116
    %v257 = vpack.c.b16 %v194, %v193
    %v258 = vpack.c.b16 %v196, %v195
    %v259 = vpack.c.b16 %v198, %v197
    %v260 = vpack.c.b16 %v200, %v199
    %v261 = vpack.c.b16 %v202, %v201
    %v262 = vpack.c.b16 %v204, %v203
    %v263 = vpack.c.b16 %v206, %v205
    %v264 = vpack.c.b16 %v208, %v207
    %v265 = vpack.c.b16 %v210, %v209
    %v266 = vpack.c.b16 %v212, %v211
    %v267 = vpack.c.b16 %v214, %v213
    %v268 = vpack.c.b16 %v216, %v215
    %v269 = vpack.c.b16 %v218, %v217
    %v270 = vpack.c.b16 %v220, %v219
    %v271 = vpack.c.b16 %v222, %v221
    %v272 = vpack.c.b16 %v224, %v223
    %v273 = vpack.c.b16 %v226, %v225
    %v274 = vpack.c.b16 %v228, %v227
    %v275 = vpack.c.b16 %v230, %v229
    %v276 = vpack.c.b16 %v232, %v231
    %v277 = vpack.c.b16 %v234, %v233
    %v278 = vpack.c.b16 %v236, %v235
    %v279 = vpack.c.b16 %v238, %v237
    %v280 = vpack.c.b16 %v240, %v239
    %v281 = vpack.c.b16 %v242, %v241
    %v282 = vpack.c.b16 %v244, %v243
    %v283 = vpack.c.b16 %v246, %v245
    %v284 = vpack.c.b16 %v248, %v247
    %v285 = vpack.c.b16 %v250, %v249
    %v286 = vpack.c.b16 %v252, %v251
    %v287 = vpack.c.b16 %v254, %v253
    %v288 = vpack.c.b16 %v256, %v255
    %321 = vmatprep.subr.bf16.mxu0 0
    %322 = vmatpush1.bf16.msra.mxu0 %v257
    %323 = vmatprep.subr.bf16.mxu0 0
    %324 = vmatpush1.bf16.msra.mxu0 %v258
    %325 = vmatprep.subr.bf16.mxu0 0
    %326 = vmatpush1.bf16.msra.mxu0 %v259
    %327 = vmatprep.subr.bf16.mxu0 0
    %328 = vmatpush1.bf16.msra.mxu0 %v260
    %329 = vmatprep.subr.bf16.mxu0 0
    %330 = vmatpush1.bf16.msra.mxu0 %v261
    %331 = vmatprep.subr.bf16.mxu0 0
    %332 = vmatpush1.bf16.msra.mxu0 %v262
    %333 = vmatprep.subr.bf16.mxu0 0
    %334 = vmatpush1.bf16.msra.mxu0 %v263
    %335 = vmatprep.subr.bf16.mxu0 0
    %336 = vmatpush1.bf16.msra.mxu0 %v264
    %337 = vmatprep.subr.bf16.mxu0 0
    %338 = vmatpush1.bf16.msra.mxu0 %v265
    %339 = vmatprep.subr.bf16.mxu0 0
    %340 = vmatpush1.bf16.msra.mxu0 %v266
    %341 = vmatprep.subr.bf16.mxu0 0
    %342 = vmatpush1.bf16.msra.mxu0 %v267
    %343 = vmatprep.subr.bf16.mxu0 0
    %344 = vmatpush1.bf16.msra.mxu0 %v268
    %345 = vmatprep.subr.bf16.mxu0 0
    %346 = vmatpush1.bf16.msra.mxu0 %v269
    %347 = vmatprep.subr.bf16.mxu0 0
    %348 = vmatpush1.bf16.msra.mxu0 %v270
    %349 = vmatprep.subr.bf16.mxu0 0
    %350 = vmatpush1.bf16.msra.mxu0 %v271
    %351 = vmatprep.subr.bf16.mxu0 0
    %352 = vmatpush1.bf16.msra.mxu0 %v272
    %353 = vmatprep.mubr.bf16.mxu0 %v50
    %354 = vmatmul.mubr.bf16.gmra.mrb[0].mxu0 %v49
    %v355 = vpop.f32.mrb[0].mxu0
    %v356 = vadd.f32 %v128, %v355
    %v357 = vpop.f32.mrb[0].mxu0
    %v358 = vpop.f32.mrb[0].mxu0
    %v359 = vpop.f32.mrb[0].mxu0
    %360 = vdwg.mxu0
    %361 = vmatprep.subr.bf16.mxu0 0
    %362 = vmatpush1.bf16.msra.mxu0 %v273
    %363 = vmatprep.subr.bf16.mxu0 0
    %364 = vmatpush1.bf16.msra.mxu0 %v274
    %365 = vmatprep.subr.bf16.mxu0 0
    %366 = vmatpush1.bf16.msra.mxu0 %v275
    %367 = vmatprep.subr.bf16.mxu0 0
    %368 = vmatpush1.bf16.msra.mxu0 %v276
    %369 = vmatprep.subr.bf16.mxu0 0
    %370 = vmatpush1.bf16.msra.mxu0 %v277
    %371 = vmatprep.subr.bf16.mxu0 0
    %372 = vmatpush1.bf16.msra.mxu0 %v278
    %373 = vmatprep.subr.bf16.mxu0 0
    %374 = vmatpush1.bf16.msra.mxu0 %v279
    %375 = vmatprep.subr.bf16.mxu0 0
    %376 = vmatpush1.bf16.msra.mxu0 %v280
    %377 = vmatprep.subr.bf16.mxu0 0
    %378 = vmatpush1.bf16.msra.mxu0 %v281
    %379 = vmatprep.subr.bf16.mxu0 0
    %380 = vmatpush1.bf16.msra.mxu0 %v282
    %381 = vmatprep.subr.bf16.mxu0 0
    %382 = vmatpush1.bf16.msra.mxu0 %v283
    %383 = vmatprep.subr.bf16.mxu0 0
    %384 = vmatpush1.bf16.msra.mxu0 %v284
    %385 = vmatprep.subr.bf16.mxu0 0
    %386 = vmatpush1.bf16.msra.mxu0 %v285
    %387 = vmatprep.subr.bf16.mxu0 0
    %388 = vmatpush1.bf16.msra.mxu0 %v286
    %389 = vmatprep.subr.bf16.mxu0 0
    %390 = vmatpush1.bf16.msra.mxu0 %v287
    %391 = vmatprep.subr.bf16.mxu0 0
    %392 = vmatpush1.bf16.msra.mxu0 %v288
    %393 = vmatprep.mubr.bf16.mxu0 %v52
    %394 = vmatmul.mubr.bf16.gmra.mrb[0].mxu0 %v51
    %v395 = vpop.f32.mrb[0].mxu0
    %v396 = vadd.f32 %v356, %v395
    %v397 = vpop.f32.mrb[0].mxu0
    %v398 = vpop.f32.mrb[0].mxu0
    %v399 = vpop.f32.mrb[0].mxu0
    %400 = vdwg.mxu0
    %v401 = vlaneseq
    %v402 = vshrl.u32 %v401, 7
    %v403 = vsub.s32 1, %v402
    %v404 = vrot.slane %v117, %v403
    %v405 = vadd.f32 %v396, %v404
    %406 = vmax.xlane.f32.xlu0 %v405
    %v407 = vpop.xlane.xlu0 %406
    %v408 = vsub.f32 %v405, %v407
    %v409 = vmul.f32 %v408, 1.442695
    %v410 = vpow.pop %v409
    %411 = vadd.xlane.f32.xlu0 %v410
    %v412 = vpop.xlane.xlu0 %411
    %v413 = vrcp.pop %v412
    %v414 = vmul.f32 %v410, %v413
    %415 = vst [vmem:[#allocation7] sm:$0xff] %v414
    // Predicated region
    $region26: #{tpu_custom_call.1} parent=1 // pred_check
      _
    $region27: #{tpu_custom_call.1} parent=1 // pred_check_branch
      %417 = sbr.rel (0) target = $region29
    $region28: #{tpu_custom_call.1} parent=1 // pred_region
      %s419 = ssub.s32 128, 128
      %420 = vsyncadd [#allocation4], %s419
      %s422 = sshll.u32 [#allocation7], 4
      %s423 = int_to_ptr.vmem [resolvable:$true] %s422
      %425 = dma.vmem_to_hbm [thread:$0]  %s423, 128, %s4, [#allocation4]
    $region29: #{tpu_custom_call.1} parent=1 // pred_fallthru
      _
    // Predicated region
    $region30: #{tpu_custom_call.1} parent=1 // pred_check
      _
    $region31: #{tpu_custom_call.1} parent=1 // pred_check_branch
      %427 = sbr.rel (0) target = $region33
    $region32: #{tpu_custom_call.1} parent=1 // pred_region
      %428 = dma.done [#allocation4], 128
    $region33: #{tpu_custom_call.1} parent=1 // pred_fallthru
      _
    %429 = vsyncpa [#allocation3], 1
    %430 = vsyncpa [#allocation6], 1
    %431 = vsyncpa [#allocation4], 1

</llo_original>
